<compile_context>
chip_gen: v5e
topology: v5e:2x2
jax: 0.10.0
libtpu: 0.0.40
codegen_flags: <defaults>
</compile_context>

<pallas_src>
import functools
import numpy as np
import jax
import jax.numpy as jnp
from jax.experimental import pallas as pl
from jax.experimental.pallas import tpu as pltpu


# ---------------------------------------------------------------------------
# Host-side feature construction (verbatim port of BaseNet's fen/uci encoding).
# This is string parsing / glue, not TPU compute.
# ---------------------------------------------------------------------------
FROM_FILE = {'a': 0, 'b': 1, 'c': 2, 'd': 3, 'e': 4, 'f': 5, 'g': 6, 'h': 7}
PIECES = 'pnbrqkPNBRQK'
INPUT_SIZE = 8 * 8 * 6 * 2 + 4 + 8 + 8 * 8 + 8 * 8   # 908
BIAS_COL = INPUT_SIZE                                 # folded-bias feature column
D_PAD = 1024                                          # 908 -> 1024 (8,128)-clean
W_ROWS = 8                                            # weight stack padded to 8 sublanes


def board_string_to_vector(board_string):
    vec = np.zeros((8, 8, 12), dtype=np.bool_)
    with_spaces = board_string
    for d in range(1, 9):
        with_spaces = with_spaces.replace(str(d), ' ' * d)
    ranks = with_spaces.split('/')
    for i_rank, rank in enumerate(reversed(ranks)):
        for i_file, occupant_str in enumerate(rank):
            if occupant_str != ' ':
                vec[i_file, i_rank, PIECES.index(occupant_str)] = 1
    return vec.flatten()


def fen_to_vector(fen):
    board_string, _to_play, castling, en_passant_string = fen.split(' ')
    board_vector = board_string_to_vector(board_string)
    castling_vector = np.zeros(4, dtype=np.bool_)
    castling_vector[0] = 'K' in castling
    castling_vector[1] = 'Q' in castling
    castling_vector[2] = 'k' in castling
    castling_vector[3] = 'q' in castling
    en_passant = np.zeros(8, dtype=np.int64)
    for file, ii in FROM_FILE.items():
        if file in en_passant_string:
            en_passant[ii] = 1
    return np.concatenate((board_vector, castling_vector, en_passant))


def uci_to_vector(uci):
    uci2d0 = np.zeros((8, 8), dtype=np.bool_)
    uci2d1 = np.zeros((8, 8), dtype=np.bool_)
    uci2d0[FROM_FILE[uci[0]], int(uci[1]) - 1] = 1
    uci2d1[FROM_FILE[uci[2]], int(uci[3]) - 1] = 1
    return np.concatenate((uci2d0.flatten(), uci2d1.flatten()), axis=0)


def fen_uci_lists_to_inputs(fen_list, uci_lists):
    uci_vector_list = []
    for uci_list in uci_lists:
        for uci in uci_list:
            uci_vector_list.append(uci_to_vector(uci))
    uci_array = np.array(uci_vector_list)
    fen_array = np.array([fen_to_vector(fen) for fen in fen_list])
    move_counts = [len(uci_list) for uci_list in uci_lists]
    fen_array = np.repeat(fen_array, move_counts, axis=0)
    inputs = np.concatenate((fen_array, uci_array), axis=1)
    return inputs.astype(np.float32), move_counts


def _cdiv(a, b):
    return (a + b - 1) // b


def _round_up(v, m):
    return _cdiv(v, m) * m


def _choose_row_tiling(n, target_tile_rows):
    """Row tiling with bounded padding waste and >=2 tiles when possible.

    Pads n to a multiple of 128 first, then picks the number of tiles so that
    relative padding waste is < 128/target_tile_rows (~3% at 4096), instead of
    round_up(n, tile_rows) which could waste up to ~2x.  Forces >=2 tiles when
    there are >=256 rows so ("parallel",) can split work across v7x's 2 TCs.
    """
    k = _round_up(max(n, 1), 128) // 128            # number of 128-row chunks
    target_chunks = max(1, target_tile_rows // 128)
    t = max(_cdiv(k, target_chunks), min(2, k))     # number of row tiles
    chunks_per_tile = _cdiv(k, t)
    tile_rows = chunks_per_tile * 128
    n_pad = tile_rows * t
    return tile_rows, n_pad


# ---------------------------------------------------------------------------
# Kernel 1: affinity matvec (folded MLP), row-tiled, int8 input, lane-dense output.
#   w_ref : (W_ROWS, D_PAD)   bf16  [row 0 = hi, row 1 = lo part of w_eff, rest 0]
#   x_ref : (D_PAD, TILE_R)   int8  (features on sublanes, rows on lanes, values 0/1)
#   a_ref : (1, TILE_R)       f32   (lane-dense affinities)
# ---------------------------------------------------------------------------
def affinity_kernel(w_ref, x_ref, a_ref):
    # int8 0/1 -> bf16 is exact; the VPU upcast is hidden under the (dominant) DMA.
    xb = x_ref[...].astype(jnp.bfloat16)                                   # (D_PAD, TILE_R)
    # bf16 x bf16 MXU matmul, f32 accumulate; hi+lo weight split recovers ~f32
    # weight precision (inputs are exactly representable, so no x error).
    acc = jnp.dot(w_ref[...], xb, preferred_element_type=jnp.float32)      # (W_ROWS, TILE_R)
    a_ref[...] = jnp.sum(acc, axis=0, keepdims=True)                       # (1, TILE_R)


def affinities_pallas(x_t, w_stack, tile_rows):
    d_pad, n_pad = x_t.shape
    num_tiles = n_pad // tile_rows
    flops = int(2 * W_ROWS * d_pad * n_pad)
    bytes_accessed = int(x_t.size * 1 + w_stack.size * 2 + n_pad * 4)
    return pl.pallas_call(
        affinity_kernel,
        grid=(num_tiles,),
        in_specs=[
            pl.BlockSpec((W_ROWS, d_pad), lambda i: (0, 0)),
            pl.BlockSpec((d_pad, tile_rows), lambda i: (0, i)),
        ],
        out_specs=pl.BlockSpec((1, tile_rows), lambda i: (0, i)),
        out_shape=jax.ShapeDtypeStruct((1, n_pad), jnp.float32),
        compiler_params=pltpu.CompilerParams(
            dimension_semantics=("parallel",),      # v7x: both TCs take row tiles
            # int8 x at 4096 rows is 4 MiB/buffer (8 MiB double-buffered); 32 MiB is
            # safe headroom on every generation, including v7x's 64 MiB VMEM.
            vmem_limit_bytes=32 * 1024 * 1024,
        ),
        cost_estimate=pl.CostEstimate(
            flops=flops, transcendentals=0, bytes_accessed=bytes_accessed),
    )(w_stack, x_t)


# ---------------------------------------------------------------------------
# Kernel 2: vectorized grouped softmax over a (G_pad, M_pad) slab.
#   counts_ref : (G_TILE, 1)      int32   (moves per group; 0 for padded groups)
#   aff_ref    : (G_TILE, M_PAD)  f32     (gathered affinities, group-major)
#   prob_ref   : (G_TILE, M_PAD)  f32
# One pass, full vreg occupancy (groups on sublanes, moves on lanes), no output
# re-read -- replaces the old one-grid-step-per-group (1, N) kernel.
# ---------------------------------------------------------------------------
def slab_softmax_kernel(counts_ref, aff_ref, prob_ref):
    counts = counts_ref[...]                                            # (G, 1) int32
    aff = aff_ref[...]                                                  # (G, M) f32
    lane = jax.lax.broadcasted_iota(jnp.int32, aff.shape, 1)
    mask = lane < counts                                                # (G, M) bool
    neg_inf = jnp.float32(-1e30)                                        # sentinel; fine at this scale
    m = jnp.max(jnp.where(mask, aff, neg_inf), axis=1, keepdims=True)   # (G, 1)
    e = jnp.where(mask, jnp.exp(aff - m), 0.0)                          # (G, M)
    # Clamp the denominator so zero-count (padded) groups yield 0*finite = 0, not NaN.
    denom = jnp.maximum(jnp.sum(e, axis=1, keepdims=True), jnp.float32(1e-30))
    prob_ref[...] = e / denom


def slab_softmax_pallas(counts_pad, slab, g_tile):
    g_pad, m_pad = slab.shape
    return pl.pallas_call(
        slab_softmax_kernel,
        grid=(g_pad // g_tile,),
        in_specs=[
            pl.BlockSpec((g_tile, 1), lambda i: (i, 0)),
            pl.BlockSpec((g_tile, m_pad), lambda i: (i, 0)),
        ],
        out_specs=pl.BlockSpec((g_tile, m_pad), lambda i: (i, 0)),
        out_shape=jax.ShapeDtypeStruct((g_pad, m_pad), jnp.float32),
        compiler_params=pltpu.CompilerParams(dimension_semantics=("parallel",)),
    )(counts_pad, slab)


# ---------------------------------------------------------------------------
# Device pipeline: one jitted program = affinity kernel -> tiny gather -> softmax.
# ---------------------------------------------------------------------------
@functools.partial(jax.jit, static_argnums=(4, 5))
def _device_forward(x_t, w_stack, gidx, counts_pad, tile_rows, g_tile):
    aff = affinities_pallas(x_t, w_stack, tile_rows)                    # (1, n_pad) f32
    # Tiny reindex (few KB) into the (groups, moves) slab; indices built on host.
    slab = jnp.take(aff[0], gidx.reshape(-1), axis=0).reshape(gidx.shape)
    return slab_softmax_pallas(counts_pad, slab, g_tile)


# ---------------------------------------------------------------------------
# Host wrapper (mirrors BaseNet.forward_select).
# ---------------------------------------------------------------------------
def fold_params(w1, b1, w2, b2):
    """Identity activation => stacked Linear layers fold exactly to one affine map."""
    w_eff = jnp.matmul(w1, w2)                       # (908, 1)
    b_eff = jnp.matmul(b1, w2) + b2                  # (1, 1)
    w_full = jnp.zeros((D_PAD,), jnp.float32)
    w_full = w_full.at[:INPUT_SIZE].set(w_eff[:, 0])
    w_full = w_full.at[BIAS_COL].set(b_eff[0, 0])    # bias rides on the padded column
    # hi/lo bf16 split of the f32 weight vector (keeps ~f32 matvec precision on MXU).
    w_hi = w_full.astype(jnp.bfloat16)
    w_lo = (w_full - w_hi.astype(jnp.float32)).astype(jnp.bfloat16)
    w_stack = jnp.zeros((W_ROWS, D_PAD), jnp.bfloat16)
    w_stack = w_stack.at[0].set(w_hi).at[1].set(w_lo)
    return w_stack                                    # (8, D_PAD) bf16; rows 2.. are 0


def forward_select(fen_list, uci_lists, params, target_tile_rows=4096):
    """Returns (uci_lists, per-position probability arrays), like BaseNet.forward_select."""
    inputs_np, move_counts = fen_uci_lists_to_inputs(fen_list, uci_lists)
    n, d = inputs_np.shape
    assert d == INPUT_SIZE
    num_groups = len(move_counts)

    tile_rows, n_pad = _choose_row_tiling(n, target_tile_rows)

    # Transposed, feature-padded int8 input (values are exactly 0/1): (D_PAD, n_pad).
    x_pad = np.zeros((n_pad, D_PAD), dtype=np.int8)
    x_pad[:n, :INPUT_SIZE] = inputs_np.astype(np.int8)
    x_pad[:, BIAS_COL] = 1            # bias feature = 1 (padded rows masked out later)
    x_t = jnp.asarray(np.ascontiguousarray(x_pad.T))

    w_stack = fold_params(*params)

    # Grouped-softmax slab layout: groups on sublanes, moves on lanes.
    max_moves = max(move_counts) if move_counts else 1
    m_pad = _round_up(max(max_moves, 1), 128)
    g8 = _round_up(max(num_groups, 1), 8)
    g_tile = min(g8, 1024)
    g_pad = _round_up(g8, g_tile)

    starts = np.zeros((num_groups,), dtype=np.int64)
    if num_groups > 1:
        starts[1:] = np.cumsum(move_counts[:-1])
    gidx = np.zeros((g_pad, m_pad), dtype=np.int32)       # default 0 -> masked anyway
    counts_pad = np.zeros((g_pad, 1), dtype=np.int32)
    for g, c in enumerate(move_counts):
        gidx[g, :c] = starts[g] + np.arange(c, dtype=np.int32)
        counts_pad[g, 0] = c

    prob_slab = _device_forward(x_t, w_stack, jnp.asarray(gidx),
                                jnp.asarray(counts_pad), tile_rows, g_tile)
    prob_slab = np.asarray(jax.block_until_ready(prob_slab))

    split_probabilities = [prob_slab[g, :c] for g, c in enumerate(move_counts)]
    return uci_lists, split_probabilities


if __name__ == "__main__":
    # Deterministic synthetic MLP parameters: 908 -> 32 -> 1, identity activation
    # (BaseNet.__init__ leaves `layers` empty, so we instantiate a concrete stack).
    hidden = 32
    key = jax.random.PRNGKey(0)
    k1, k2, k3, k4 = jax.random.split(key, 4)
    w1 = jax.random.normal(k1, (INPUT_SIZE, hidden), dtype=jnp.float32) * 0.05
    b1 = jax.random.normal(k2, (1, hidden), dtype=jnp.float32) * 0.05
    w2 = jax.random.normal(k3, (hidden, 1), dtype=jnp.float32) * 0.05
    b2 = jax.random.normal(k4, (1, 1), dtype=jnp.float32) * 0.05
    params = (w1, b1, w2, b2)

    # TODO(synk): BaseNet.legal_ucis needs the `chess` package (host-side move
    # generation); we supply legal move lists directly, matching forward_select().
    fen_list = [
        "rnbqkbnr/pppppppp/8/8/8/8/PPPPPPPP/RNBQKBNR w KQkq -",
        "rnbqkbnr/pp1ppppp/8/2p5/4P3/8/PPPP1PPP/RNBQKBNR w KQkq c6",
    ]
    uci_lists = [
        ["e2e4", "d2d4", "g1f3", "b1c3", "a2a3"],
        ["g1f3", "d2d4", "f1c4"],
    ]

    ucis, probabilities = forward_select(fen_list, uci_lists, params)

    # Reference check against a float64 numpy forward (unfolded 2-layer MLP + softmax).
    inputs_np, move_counts = fen_uci_lists_to_inputs(fen_list, uci_lists)
    w1n, b1n, w2n, b2n = (np.asarray(a, dtype=np.float64) for a in params)
    aff_ref = (inputs_np.astype(np.float64) @ w1n + b1n) @ w2n + b2n   # (n, 1)
    row = 0
    for c, p in zip(move_counts, probabilities):
        a = aff_ref[row:row + c, 0]
        row += c
        ref = np.exp(a - a.max())
        ref /= ref.sum()
        assert np.all(np.isfinite(p))
        assert abs(float(p.sum()) - 1.0) < 1e-4, float(p.sum())
        assert np.allclose(p, ref, atol=1e-3, rtol=1e-3), (p, ref)

    print("KERNEL_OK")
</pallas_src>

<mosaic_0001>
module attributes {stable_mosaic.version = 11 : i64} {
  func.func @affinity_kernel(%arg0: i32, %arg1: memref<8x1024xbf16, #tpu.memory_space<vmem>>, %arg2: memref<1024x128xi8, #tpu.memory_space<vmem>>, %arg3: memref<1x128xf32, #tpu.memory_space<vmem>>) attributes {dimension_semantics = [#tpu.dimension_semantics<parallel>], iteration_bounds = array<i64: 1>, scalar_prefetch = 0 : i64, scratch_operands = 0 : i64, tpu.core_type = #tpu.core_type<tc>, window_params = [{pipeline_mode = #tpu.pipeline_mode<synchronous>, transform_indices = @transform_0, window_bounds = array<i64: 8, 1024>}, {transform_indices = @transform_1, window_bounds = array<i64: 1024, 128>}, {transform_indices = @transform_2, window_bounds = array<i64: 1, 128>}]} {
    %c0 = arith.constant 0 : index
    %c0_0 = arith.constant 0 : index
    %0 = vector.load %arg2[%c0, %c0_0] : memref<1024x128xi8, #tpu.memory_space<vmem>>, vector<1024x128xi8>
    %1 = arith.sitofp %0 : vector<1024x128xi8> to vector<1024x128xbf16>
    %c0_1 = arith.constant 0 : index
    %c0_2 = arith.constant 0 : index
    %2 = vector.load %arg1[%c0_1, %c0_2] : memref<8x1024xbf16, #tpu.memory_space<vmem>>, vector<8x1024xbf16>
    %cst = arith.constant dense<0.000000e+00> : vector<8x128xf32>
    %3 = tpu.matmul %2, %1, %cst {dimension_numbers = #tpu.dot_dimension_numbers<[1], [0], [0], [1], [0, 0, 1, 1], [], []>} : vector<8x1024xbf16>, vector<1024x128xbf16>, vector<8x128xf32> -> vector<8x128xf32>
    %cst_3 = arith.constant dense<0.000000e+00> : vector<128xf32>
    %4 = vector.multi_reduction <add>, %3, %cst_3 [0] : vector<8x128xf32> to vector<128xf32>
    %5 = vector.shape_cast %4 : vector<128xf32> to vector<1x128xf32>
    %c0_4 = arith.constant 0 : index
    %c0_5 = arith.constant 0 : index
    %6 = vector.load %arg3[%c0_4, %c0_5] : memref<1x128xf32, #tpu.memory_space<vmem>>, vector<1x128xf32>
    tpu.vector_store %arg3[%c0_4, %c0_5], %5 {strides = array<i32>} : memref<1x128xf32, #tpu.memory_space<vmem>>, vector<1x128xf32>,
    return
  }
  func.func @transform_0(%arg0: i32) -> (i32, i32) {
    %c0_i32 = arith.constant 0 : i32
    %c0_i32_0 = arith.constant 0 : i32
    %c0_i32_1 = arith.constant 0 : i32
    return %c0_i32, %c0_i32_0 : i32, i32
  }
  func.func @transform_1(%arg0: i32) -> (i32, i32) {
    %c0_i32 = arith.constant 0 : i32
    %c0_i32_0 = arith.constant 0 : i32
    return %c0_i32, %arg0 : i32, i32
  }
  func.func @transform_2(%arg0: i32) -> (i32, i32) {
    %c0_i32 = arith.constant 0 : i32
    %c0_i32_0 = arith.constant 0 : i32
    return %c0_i32, %arg0 : i32, i32
  }
}

module attributes {stable_mosaic.version = 11 : i64} {
  func.func @slab_softmax_kernel(%arg0: i32, %arg1: memref<8x1xi32, #tpu.memory_space<vmem>>, %arg2: memref<8x128xf32, #tpu.memory_space<vmem>>, %arg3: memref<8x128xf32, #tpu.memory_space<vmem>>) attributes {dimension_semantics = [#tpu.dimension_semantics<parallel>], iteration_bounds = array<i64: 1>, scalar_prefetch = 0 : i64, scratch_operands = 0 : i64, tpu.core_type = #tpu.core_type<tc>, window_params = [{transform_indices = @transform_0, window_bounds = array<i64: 8, 1>}, {transform_indices = @transform_1, window_bounds = array<i64: 8, 128>}, {transform_indices = @transform_2, window_bounds = array<i64: 8, 128>}]} {
    %c0 = arith.constant 0 : index
    %c0_0 = arith.constant 0 : index
    %0 = vector.load %arg1[%c0, %c0_0] : memref<8x1xi32, #tpu.memory_space<vmem>>, vector<8x1xi32>
    %c0_1 = arith.constant 0 : index
    %c0_2 = arith.constant 0 : index
    %1 = vector.load %arg2[%c0_1, %c0_2] : memref<8x128xf32, #tpu.memory_space<vmem>>, vector<8x128xf32>
    %2 = tpu.iota {dimensions = array<i32: 1>} : vector<8x128xi32>
    %3 = vector.broadcast %0 : vector<8x1xi32> to vector<8x128xi32>
    %4 = arith.cmpi slt, %2, %3 : vector<8x128xi32>
    %cst = arith.constant -1.000000e+30 : f32
    %5 = vector.broadcast %cst : f32 to vector<8x128xf32>
    %6 = arith.select %4, %1, %5 : vector<8x128xi1>, vector<8x128xf32>
    %cst_3 = arith.constant dense<0xFF800000> : vector<8xf32>
    %7 = vector.multi_reduction <maximumf>, %6, %cst_3 [1] : vector<8x128xf32> to vector<8xf32>
    %8 = vector.shape_cast %7 : vector<8xf32> to vector<8x1xf32>
    %9 = vector.broadcast %8 : vector<8x1xf32> to vector<8x128xf32>
    %10 = arith.subf %1, %9 : vector<8x128xf32>
    %11 = math.exp %10 : vector<8x128xf32>
    %cst_4 = arith.constant 0.000000e+00 : f32
    %12 = vector.broadcast %cst_4 : f32 to vector<8x128xf32>
    %13 = arith.select %4, %11, %12 : vector<8x128xi1>, vector<8x128xf32>
    %cst_5 = arith.constant dense<0.000000e+00> : vector<8xf32>
    %14 = vector.multi_reduction <add>, %13, %cst_5 [1] : vector<8x128xf32> to vector<8xf32>
    %15 = vector.shape_cast %14 : vector<8xf32> to vector<8x1xf32>
    %cst_6 = arith.constant 1.000000e-30 : f32
    %16 = vector.broadcast %cst_6 : f32 to vector<8x1xf32>
    %17 = arith.maximumf %15, %16 : vector<8x1xf32>
    %18 = vector.broadcast %17 : vector<8x1xf32> to vector<8x128xf32>
    %19 = arith.divf %13, %18 : vector<8x128xf32>
    %c0_7 = arith.constant 0 : index
    %c0_8 = arith.constant 0 : index
    %20 = vector.load %arg3[%c0_7, %c0_8] : memref<8x128xf32, #tpu.memory_space<vmem>>, vector<8x128xf32>
    tpu.vector_store %arg3[%c0_7, %c0_8], %19 {strides = array<i32>} : memref<8x128xf32, #tpu.memory_space<vmem>>, vector<8x128xf32>,
    return
  }
  func.func @transform_0(%arg0: i32) -> (i32, i32) {
    %c0_i32 = arith.constant 0 : i32
    %c0_i32_0 = arith.constant 0 : i32
    return %arg0, %c0_i32 : i32, i32
  }
  func.func @transform_1(%arg0: i32) -> (i32, i32) {
    %c0_i32 = arith.constant 0 : i32
    %c0_i32_0 = arith.constant 0 : i32
    return %arg0, %c0_i32 : i32, i32
  }
  func.func @transform_2(%arg0: i32) -> (i32, i32) {
    %c0_i32 = arith.constant 0 : i32
    %c0_i32_0 = arith.constant 0 : i32
    return %arg0, %c0_i32 : i32, i32
  }
}

</mosaic_0001>

<llo_original>
// kernel: _device_forward.3
$region0: #{_device_forward.3}
  #allocation0 [shape = 'u32[]', space=smem, size = 0x4, offset = 0x4, fixed_abs, tag = 'smem constant byte address 0x4 - core index']
  #allocation1 [shape = 'u32[72,128]{1,0:T(1,128)}', space=vmem, size = 0x9000, scoped, tag = 'internal scratch']
  %s0 = inlined_call_operand.vmem [shape: s32[8,1], index: 0, kind: input, shape index: {}]
  %s1 = inlined_call_operand.vmem [shape: f32[8,128], index: 1, kind: input, shape index: {}]
  %s2 = inlined_call_operand.hbm [shape: f32[8,128], index: 2, kind: output, shape index: {}]
  %s3 = sld [smem:[#allocation0]]
  $region18: #{_device_forward.3} parent=0
    _
  %s5 = ssub.s32 1, %s3
  %s6 = scalar_select 0, %s5, %s3
  $region1: #{_device_forward.3} parent=0
    #allocation2 [shape = 'u8[4096]{0}', space=vmem, size = 0x1000, scoped, tag = 'output window, operand 0, single buffered']
    #allocation3 [shape = 's32[1]{0}', space=sflag, size = 0x4, scoped, tag = 'scoped memory for _device_forward.3']
    %7 = vsyncpa [#allocation3], 0
    // Predicated region
    $region2: #{_device_forward.3} parent=1 // pred_check
      _
    $region3: #{_device_forward.3} parent=1 // pred_check_branch
      %9 = sbr.rel (0) target = $region5
    $region4: #{_device_forward.3} parent=1 // pred_region
      _
    $region5: #{_device_forward.3} parent=1 // pred_fallthru
      _
    // Predicated region
    $region6: #{_device_forward.3} parent=1 // pred_check
      _
    $region7: #{_device_forward.3} parent=1 // pred_check_branch
      %11 = sbr.rel (0) target = $region9
    $region8: #{_device_forward.3} parent=1 // pred_region
      _
    $region9: #{_device_forward.3} parent=1 // pred_fallthru
      _
    %v12 = vld [vmem:[%s0] sm:$0xff]
    %v13 = vld [vmem:[%s1] sm:$0xff]
    %v14 = vlaneseq
    %v15 = vand.u32 %v14, 127
    %16 = vset.pattern.permute.xlu0 0
    %17 = vperm.xlu0 %16, %v12
    %v18 = vpop.permute.xlu0 %17
    %vm19 = vcmp.lt.s32.totalorder %v15, %v18
    %v20 = vsel %vm19, %v13, -1e+30
    %21 = vmax.xlane.f32.xlu0 %v20
    %v22 = vpop.xlane.xlu0 %21
    %v23 = vsub.f32 %v13, %v22
    %v24 = vmul.f32 %v23, 1.442695
    %v25 = vpow.pop %v24
    %v26 = vsel %vm19, %v25, 0.0
    %27 = vadd.xlane.f32.xlu0 %v26
    %v28 = vpop.xlane.xlu0 %27
    %v29 = vmax.f32 %v28, 1e-30
    %v30 = vrcp.pop %v29
    %v31 = vmul.f32 %v29, %v30
    %v32 = vsub.f32 1.0, %v31
    %v33 = vmul.f32 %v30, %v32
    %v34 = vadd.f32 %v30, %v33
    %vm35 = vweird.f32 %v29
    %vm36 = vweird.f32 %v30
    %vm37 = vmor %vm35, %vm36
    %v38 = vsel %vm37, %v30, %v34
    %v39 = vand.u32 2147483647, %v29
    %vm40 = vcmp.eq.f32.partialorder %v39, 8.507059e+37
    %v41 = vand.u32 %v29, 2147483648
    %v42 = vor.u32 1.1754944e-38, %v41
    %v43 = vsel %vm40, %v42, %v38
    %v44 = vmul.f32 %v26, %v43
    %45 = vst [vmem:[#allocation2] sm:$0xff] %v44
    // Predicated region
    $region10: #{_device_forward.3} parent=1 // pred_check
      _
    $region11: #{_device_forward.3} parent=1 // pred_check_branch
      %47 = sbr.rel (0) target = $region13
    $region12: #{_device_forward.3} parent=1 // pred_region
      %49 = vsyncadd [#allocation3], 0
      %s51 = sshll.u32 [#allocation2], 4
      %s52 = int_to_ptr.vmem [resolvable:$true] %s51
      %s53 = sshll.u32 %s2, 4
      %s54 = int_to_ptr.hbm [resolvable:$true] %s53
      %56 = dma.vmem_to_hbm [thread:$0]  %s52, 128, %s54, [#allocation3]
    $region13: #{_device_forward.3} parent=1 // pred_fallthru
      _
    // Predicated region
    $region14: #{_device_forward.3} parent=1 // pred_check
      _
    $region15: #{_device_forward.3} parent=1 // pred_check_branch
      %58 = sbr.rel (0) target = $region17
    $region16: #{_device_forward.3} parent=1 // pred_region
      %60 = dma.done [#allocation3], 128
    $region17: #{_device_forward.3} parent=1 // pred_fallthru
      _
    %61 = vsyncpa [#allocation3], 1

// kernel: _device_forward.2
$region0: #{_device_forward.2}
  #allocation0 [shape = 'u32[]', space=smem, size = 0x4, offset = 0x4, fixed_abs, tag = 'smem constant byte address 0x4 - core index']
  #allocation1 [shape = 'u32[72,128]{1,0:T(1,128)}', space=vmem, size = 0x9000, scoped, tag = 'internal scratch']
  %s0 = inlined_call_operand.vmem [shape: bf16[8,1024], index: 0, kind: input, shape index: {}]
  %s1 = inlined_call_operand.hbm [shape: s8[1024,128], index: 1, kind: input, shape index: {}]
  %s2 = inlined_call_operand.vmem [shape: f32[1,128], index: 2, kind: output, shape index: {}]
  %s3 = sld [smem:[#allocation0]]
  $region22: #{_device_forward.2} parent=0
    _
  %s5 = ssub.s32 1, %s3
  %s6 = scalar_select 0, %s5, %s3
  $region1: #{_device_forward.2} parent=0
    #allocation2 [shape = 'u8[131072]{0}', space=vmem, size = 0x20000, scoped, tag = 'input window, operand 1, single buffered']
    #allocation3 [shape = 's32[1]{0}', space=sflag, size = 0x4, scoped, tag = 'scoped memory for _device_forward.2']
    %7 = vsyncpa [#allocation3], 0
    // Predicated region
    $region2: #{_device_forward.2} parent=1 // pred_check
      _
    $region3: #{_device_forward.2} parent=1 // pred_check_branch
      %9 = sbr.rel (0) target = $region5
    $region4: #{_device_forward.2} parent=1 // pred_region
      _
    $region5: #{_device_forward.2} parent=1 // pred_fallthru
      _
    // Predicated region
    $region6: #{_device_forward.2} parent=1 // pred_check
      _
    $region7: #{_device_forward.2} parent=1 // pred_check_branch
      %11 = sbr.rel (0) target = $region9
    $region8: #{_device_forward.2} parent=1 // pred_region
      %13 = vsyncadd [#allocation3], 0
      %s14 = sshll.u32 %s1, 4
      %s15 = int_to_ptr.hbm [resolvable:$true] %s14
      %s16 = sshll.u32 [#allocation2], 4
      %s17 = int_to_ptr.vmem [resolvable:$true] %s16
      %22 = dma.hbm_to_vmem [thread:$0]  %s15, 4096, %s17, [#allocation3], 128, 128, 8
    $region9: #{_device_forward.2} parent=1 // pred_fallthru
      _
    // Predicated region
    $region10: #{_device_forward.2} parent=1 // pred_check
      _
    $region11: #{_device_forward.2} parent=1 // pred_check_branch
      %24 = sbr.rel (0) target = $region13
    $region12: #{_device_forward.2} parent=1 // pred_region
      %26 = dma.done [#allocation3], 4096
    $region13: #{_device_forward.2} parent=1 // pred_fallthru
      _
    %v27 = vld [vmem:[#allocation2] sm:$0xff]
    %v28 = vld [vmem:[#allocation2 + $0x8] sm:$0xff]
    %v29 = vld [vmem:[#allocation2 + $0x10] sm:$0xff]
    %v30 = vld [vmem:[#allocation2 + $0x18] sm:$0xff]
    %v31 = vld [vmem:[#allocation2 + $0x20] sm:$0xff]
    %v32 = vld [vmem:[#allocation2 + $0x28] sm:$0xff]
    %v33 = vld [vmem:[#allocation2 + $0x30] sm:$0xff]
    %v34 = vld [vmem:[#allocation2 + $0x38] sm:$0xff]
    %v35 = vld [vmem:[#allocation2 + $0x40] sm:$0xff]
    %v36 = vld [vmem:[#allocation2 + $0x48] sm:$0xff]
    %v37 = vld [vmem:[#allocation2 + $0x50] sm:$0xff]
    %v38 = vld [vmem:[#allocation2 + $0x58] sm:$0xff]
    %v39 = vld [vmem:[#allocation2 + $0x60] sm:$0xff]
    %v40 = vld [vmem:[#allocation2 + $0x68] sm:$0xff]
    %v41 = vld [vmem:[#allocation2 + $0x70] sm:$0xff]
    %v42 = vld [vmem:[#allocation2 + $0x78] sm:$0xff]
    %v43 = vld [vmem:[#allocation2 + $0x80] sm:$0xff]
    %v44 = vld [vmem:[#allocation2 + $0x88] sm:$0xff]
    %v45 = vld [vmem:[#allocation2 + $0x90] sm:$0xff]
    %v46 = vld [vmem:[#allocation2 + $0x98] sm:$0xff]
    %v47 = vld [vmem:[#allocation2 + $0xa0] sm:$0xff]
    %v48 = vld [vmem:[#allocation2 + $0xa8] sm:$0xff]
    %v49 = vld [vmem:[#allocation2 + $0xb0] sm:$0xff]
    %v50 = vld [vmem:[#allocation2 + $0xb8] sm:$0xff]
    %v51 = vld [vmem:[#allocation2 + $0xc0] sm:$0xff]
    %v52 = vld [vmem:[#allocation2 + $0xc8] sm:$0xff]
    %v53 = vld [vmem:[#allocation2 + $0xd0] sm:$0xff]
    %v54 = vld [vmem:[#allocation2 + $0xd8] sm:$0xff]
    %v55 = vld [vmem:[#allocation2 + $0xe0] sm:$0xff]
    %v56 = vld [vmem:[#allocation2 + $0xe8] sm:$0xff]
    %v57 = vld [vmem:[#allocation2 + $0xf0] sm:$0xff]
    %v58 = vld [vmem:[#allocation2 + $0xf8] sm:$0xff]
    %v59 = vunpack.c.0.s8 %v27
    %v60 = vunpack.c.1.s8 %v27
    %v61 = vunpack.c.2.s8 %v27
    %v62 = vunpack.c.3.s8 %v27
    %v63 = vunpack.c.0.s8 %v28
    %v64 = vunpack.c.1.s8 %v28
    %v65 = vunpack.c.2.s8 %v28
    %v66 = vunpack.c.3.s8 %v28
    %v67 = vunpack.c.0.s8 %v29
    %v68 = vunpack.c.1.s8 %v29
    %v69 = vunpack.c.2.s8 %v29
    %v70 = vunpack.c.3.s8 %v29
    %v71 = vunpack.c.0.s8 %v30
    %v72 = vunpack.c.1.s8 %v30
    %v73 = vunpack.c.2.s8 %v30
    %v74 = vunpack.c.3.s8 %v30
    %v75 = vunpack.c.0.s8 %v31
    %v76 = vunpack.c.1.s8 %v31
    %v77 = vunpack.c.2.s8 %v31
    %v78 = vunpack.c.3.s8 %v31
    %v79 = vunpack.c.0.s8 %v32
    %v80 = vunpack.c.1.s8 %v32
    %v81 = vunpack.c.2.s8 %v32
    %v82 = vunpack.c.3.s8 %v32
    %v83 = vunpack.c.0.s8 %v33
    %v84 = vunpack.c.1.s8 %v33
    %v85 = vunpack.c.2.s8 %v33
    %v86 = vunpack.c.3.s8 %v33
    %v87 = vunpack.c.0.s8 %v34
    %v88 = vunpack.c.1.s8 %v34
    %v89 = vunpack.c.2.s8 %v34
    %v90 = vunpack.c.3.s8 %v34
    %v91 = vunpack.c.0.s8 %v35
    %v92 = vunpack.c.1.s8 %v35
    %v93 = vunpack.c.2.s8 %v35
    %v94 = vunpack.c.3.s8 %v35
    %v95 = vunpack.c.0.s8 %v36
    %v96 = vunpack.c.1.s8 %v36
    %v97 = vunpack.c.2.s8 %v36
    %v98 = vunpack.c.3.s8 %v36
    %v99 = vunpack.c.0.s8 %v37
    %v100 = vunpack.c.1.s8 %v37
    %v101 = vunpack.c.2.s8 %v37
    %v102 = vunpack.c.3.s8 %v37
    %v103 = vunpack.c.0.s8 %v38
    %v104 = vunpack.c.1.s8 %v38
    %v105 = vunpack.c.2.s8 %v38
    %v106 = vunpack.c.3.s8 %v38
    %v107 = vunpack.c.0.s8 %v39
    %v108 = vunpack.c.1.s8 %v39
    %v109 = vunpack.c.2.s8 %v39
    %v110 = vunpack.c.3.s8 %v39
    %v111 = vunpack.c.0.s8 %v40
    %v112 = vunpack.c.1.s8 %v40
    %v113 = vunpack.c.2.s8 %v40
    %v114 = vunpack.c.3.s8 %v40
    %v115 = vunpack.c.0.s8 %v41
    %v116 = vunpack.c.1.s8 %v41
    %v117 = vunpack.c.2.s8 %v41
    %v118 = vunpack.c.3.s8 %v41
    %v119 = vunpack.c.0.s8 %v42
    %v120 = vunpack.c.1.s8 %v42
    %v121 = vunpack.c.2.s8 %v42
    %v122 = vunpack.c.3.s8 %v42
    %v123 = vunpack.c.0.s8 %v43
    %v124 = vunpack.c.1.s8 %v43
    %v125 = vunpack.c.2.s8 %v43
    %v126 = vunpack.c.3.s8 %v43
    %v127 = vunpack.c.0.s8 %v44
    %v128 = vunpack.c.1.s8 %v44
    %v129 = vunpack.c.2.s8 %v44
    %v130 = vunpack.c.3.s8 %v44
    %v131 = vunpack.c.0.s8 %v45
    %v132 = vunpack.c.1.s8 %v45
    %v133 = vunpack.c.2.s8 %v45
    %v134 = vunpack.c.3.s8 %v45
    %v135 = vunpack.c.0.s8 %v46
    %v136 = vunpack.c.1.s8 %v46
    %v137 = vunpack.c.2.s8 %v46
    %v138 = vunpack.c.3.s8 %v46
    %v139 = vunpack.c.0.s8 %v47
    %v140 = vunpack.c.1.s8 %v47
    %v141 = vunpack.c.2.s8 %v47
    %v142 = vunpack.c.3.s8 %v47
    %v143 = vunpack.c.0.s8 %v48
    %v144 = vunpack.c.1.s8 %v48
    %v145 = vunpack.c.2.s8 %v48
    %v146 = vunpack.c.3.s8 %v48
    %v147 = vunpack.c.0.s8 %v49
    %v148 = vunpack.c.1.s8 %v49
    %v149 = vunpack.c.2.s8 %v49
    %v150 = vunpack.c.3.s8 %v49
    %v151 = vunpack.c.0.s8 %v50
    %v152 = vunpack.c.1.s8 %v50
    %v153 = vunpack.c.2.s8 %v50
    %v154 = vunpack.c.3.s8 %v50
    %v155 = vunpack.c.0.s8 %v51
    %v156 = vunpack.c.1.s8 %v51
    %v157 = vunpack.c.2.s8 %v51
    %v158 = vunpack.c.3.s8 %v51
    %v159 = vunpack.c.0.s8 %v52
    %v160 = vunpack.c.1.s8 %v52
    %v161 = vunpack.c.2.s8 %v52
    %v162 = vunpack.c.3.s8 %v52
    %v163 = vunpack.c.0.s8 %v53
    %v164 = vunpack.c.1.s8 %v53
    %v165 = vunpack.c.2.s8 %v53
    %v166 = vunpack.c.3.s8 %v53
    %v167 = vunpack.c.0.s8 %v54
    %v168 = vunpack.c.1.s8 %v54
    %v169 = vunpack.c.2.s8 %v54
    %v170 = vunpack.c.3.s8 %v54
    %v171 = vunpack.c.0.s8 %v55
    %v172 = vunpack.c.1.s8 %v55
    %v173 = vunpack.c.2.s8 %v55
    %v174 = vunpack.c.3.s8 %v55
    %v175 = vunpack.c.0.s8 %v56
    %v176 = vunpack.c.1.s8 %v56
    %v177 = vunpack.c.2.s8 %v56
    %v178 = vunpack.c.3.s8 %v56
    %v179 = vunpack.c.0.s8 %v57
    %v180 = vunpack.c.1.s8 %v57
    %v181 = vunpack.c.2.s8 %v57
    %v182 = vunpack.c.3.s8 %v57
    %v183 = vunpack.c.0.s8 %v58
    %v184 = vunpack.c.1.s8 %v58
    %v185 = vunpack.c.2.s8 %v58
    %v186 = vunpack.c.3.s8 %v58
    %v187 = vcvt.s32.f32 %v59
    %v188 = vcvt.s32.f32 %v60
    %v189 = vcvt.s32.f32 %v61
    %v190 = vcvt.s32.f32 %v62
    %v191 = vcvt.s32.f32 %v63
    %v192 = vcvt.s32.f32 %v64
    %v193 = vcvt.s32.f32 %v65
    %v194 = vcvt.s32.f32 %v66
    %v195 = vcvt.s32.f32 %v67
    %v196 = vcvt.s32.f32 %v68
    %v197 = vcvt.s32.f32 %v69
    %v198 = vcvt.s32.f32 %v70
    %v199 = vcvt.s32.f32 %v71
    %v200 = vcvt.s32.f32 %v72
    %v201 = vcvt.s32.f32 %v73
    %v202 = vcvt.s32.f32 %v74
    %v203 = vcvt.s32.f32 %v75
    %v204 = vcvt.s32.f32 %v76
    %v205 = vcvt.s32.f32 %v77
    %v206 = vcvt.s32.f32 %v78
    %v207 = vcvt.s32.f32 %v79
    %v208 = vcvt.s32.f32 %v80
    %v209 = vcvt.s32.f32 %v81
    %v210 = vcvt.s32.f32 %v82
    %v211 = vcvt.s32.f32 %v83
    %v212 = vcvt.s32.f32 %v84
    %v213 = vcvt.s32.f32 %v85
    %v214 = vcvt.s32.f32 %v86
    %v215 = vcvt.s32.f32 %v87
    %v216 = vcvt.s32.f32 %v88
    %v217 = vcvt.s32.f32 %v89
    %v218 = vcvt.s32.f32 %v90
    %v219 = vcvt.s32.f32 %v91
    %v220 = vcvt.s32.f32 %v92
    %v221 = vcvt.s32.f32 %v93
    %v222 = vcvt.s32.f32 %v94
    %v223 = vcvt.s32.f32 %v95
    %v224 = vcvt.s32.f32 %v96
    %v225 = vcvt.s32.f32 %v97
    %v226 = vcvt.s32.f32 %v98
    %v227 = vcvt.s32.f32 %v99
    %v228 = vcvt.s32.f32 %v100
    %v229 = vcvt.s32.f32 %v101
    %v230 = vcvt.s32.f32 %v102
    %v231 = vcvt.s32.f32 %v103
    %v232 = vcvt.s32.f32 %v104
    %v233 = vcvt.s32.f32 %v105
    %v234 = vcvt.s32.f32 %v106
    %v235 = vcvt.s32.f32 %v107
    %v236 = vcvt.s32.f32 %v108
    %v237 = vcvt.s32.f32 %v109
    %v238 = vcvt.s32.f32 %v110
    %v239 = vcvt.s32.f32 %v111
    %v240 = vcvt.s32.f32 %v112
    %v241 = vcvt.s32.f32 %v113
    %v242 = vcvt.s32.f32 %v114
    %v243 = vcvt.s32.f32 %v115
    %v244 = vcvt.s32.f32 %v116
    %v245 = vcvt.s32.f32 %v117
    %v246 = vcvt.s32.f32 %v118
    %v247 = vcvt.s32.f32 %v119
    %v248 = vcvt.s32.f32 %v120
    %v249 = vcvt.s32.f32 %v121
    %v250 = vcvt.s32.f32 %v122
    %v251 = vcvt.s32.f32 %v123
    %v252 = vcvt.s32.f32 %v124
    %v253 = vcvt.s32.f32 %v125
    %v254 = vcvt.s32.f32 %v126
    %v255 = vcvt.s32.f32 %v127
    %v256 = vcvt.s32.f32 %v128
    %v257 = vcvt.s32.f32 %v129
    %v258 = vcvt.s32.f32 %v130
    %v259 = vcvt.s32.f32 %v131
    %v260 = vcvt.s32.f32 %v132
    %v261 = vcvt.s32.f32 %v133
    %v262 = vcvt.s32.f32 %v134
    %v263 = vcvt.s32.f32 %v135
    %v264 = vcvt.s32.f32 %v136
    %v265 = vcvt.s32.f32 %v137
    %v266 = vcvt.s32.f32 %v138
    %v267 = vcvt.s32.f32 %v139
    %v268 = vcvt.s32.f32 %v140
    %v269 = vcvt.s32.f32 %v141
    %v270 = vcvt.s32.f32 %v142
    %v271 = vcvt.s32.f32 %v143
    %v272 = vcvt.s32.f32 %v144
    %v273 = vcvt.s32.f32 %v145
    %v274 = vcvt.s32.f32 %v146
    %v275 = vcvt.s32.f32 %v147
    %v276 = vcvt.s32.f32 %v148
    %v277 = vcvt.s32.f32 %v149
    %v278 = vcvt.s32.f32 %v150
    %v279 = vcvt.s32.f32 %v151
    %v280 = vcvt.s32.f32 %v152
    %v281 = vcvt.s32.f32 %v153
    %v282 = vcvt.s32.f32 %v154
    %v283 = vcvt.s32.f32 %v155
    %v284 = vcvt.s32.f32 %v156
    %v285 = vcvt.s32.f32 %v157
    %v286 = vcvt.s32.f32 %v158
    %v287 = vcvt.s32.f32 %v159
    %v288 = vcvt.s32.f32 %v160
    %v289 = vcvt.s32.f32 %v161
    %v290 = vcvt.s32.f32 %v162
    %v291 = vcvt.s32.f32 %v163
    %v292 = vcvt.s32.f32 %v164
    %v293 = vcvt.s32.f32 %v165
    %v294 = vcvt.s32.f32 %v166
    %v295 = vcvt.s32.f32 %v167
    %v296 = vcvt.s32.f32 %v168
    %v297 = vcvt.s32.f32 %v169
    %v298 = vcvt.s32.f32 %v170
    %v299 = vcvt.s32.f32 %v171
    %v300 = vcvt.s32.f32 %v172
    %v301 = vcvt.s32.f32 %v173
    %v302 = vcvt.s32.f32 %v174
    %v303 = vcvt.s32.f32 %v175
    %v304 = vcvt.s32.f32 %v176
    %v305 = vcvt.s32.f32 %v177
    %v306 = vcvt.s32.f32 %v178
    %v307 = vcvt.s32.f32 %v179
    %v308 = vcvt.s32.f32 %v180
    %v309 = vcvt.s32.f32 %v181
    %v310 = vcvt.s32.f32 %v182
    %v311 = vcvt.s32.f32 %v183
    %v312 = vcvt.s32.f32 %v184
    %v313 = vcvt.s32.f32 %v185
    %v314 = vcvt.s32.f32 %v186
    %v315 = vpack.c.bf16 %v188, %v187
    %v316 = vpack.c.bf16 %v190, %v189
    %v317 = vpack.c.bf16 %v192, %v191
    %v318 = vpack.c.bf16 %v194, %v193
    %v319 = vpack.c.bf16 %v196, %v195
    %v320 = vpack.c.bf16 %v198, %v197
    %v321 = vpack.c.bf16 %v200, %v199
    %v322 = vpack.c.bf16 %v202, %v201
    %v323 = vpack.c.bf16 %v204, %v203
    %v324 = vpack.c.bf16 %v206, %v205
    %v325 = vpack.c.bf16 %v208, %v207
    %v326 = vpack.c.bf16 %v210, %v209
    %v327 = vpack.c.bf16 %v212, %v211
    %v328 = vpack.c.bf16 %v214, %v213
    %v329 = vpack.c.bf16 %v216, %v215
    %v330 = vpack.c.bf16 %v218, %v217
    %v331 = vpack.c.bf16 %v220, %v219
    %v332 = vpack.c.bf16 %v222, %v221
    %v333 = vpack.c.bf16 %v224, %v223
    %v334 = vpack.c.bf16 %v226, %v225
    %v335 = vpack.c.bf16 %v228, %v227
    %v336 = vpack.c.bf16 %v230, %v229
    %v337 = vpack.c.bf16 %v232, %v231
    %v338 = vpack.c.bf16 %v234, %v233
    %v339 = vpack.c.bf16 %v236, %v235
    %v340 = vpack.c.bf16 %v238, %v237
    %v341 = vpack.c.bf16 %v240, %v239
    %v342 = vpack.c.bf16 %v242, %v241
    %v343 = vpack.c.bf16 %v244, %v243
    %v344 = vpack.c.bf16 %v246, %v245
    %v345 = vpack.c.bf16 %v248, %v247
    %v346 = vpack.c.bf16 %v250, %v249
    %v347 = vpack.c.bf16 %v252, %v251
    %v348 = vpack.c.bf16 %v254, %v253
    %v349 = vpack.c.bf16 %v256, %v255
    %v350 = vpack.c.bf16 %v258, %v257
    %v351 = vpack.c.bf16 %v260, %v259
    %v352 = vpack.c.bf16 %v262, %v261
    %v353 = vpack.c.bf16 %v264, %v263
    %v354 = vpack.c.bf16 %v266, %v265
    %v355 = vpack.c.bf16 %v268, %v267
    %v356 = vpack.c.bf16 %v270, %v269
    %v357 = vpack.c.bf16 %v272, %v271
    %v358 = vpack.c.bf16 %v274, %v273
    %v359 = vpack.c.bf16 %v276, %v275
    %v360 = vpack.c.bf16 %v278, %v277
    %v361 = vpack.c.bf16 %v280, %v279
    %v362 = vpack.c.bf16 %v282, %v281
    %v363 = vpack.c.bf16 %v284, %v283
    %v364 = vpack.c.bf16 %v286, %v285
    %v365 = vpack.c.bf16 %v288, %v287
    %v366 = vpack.c.bf16 %v290, %v289
    %v367 = vpack.c.bf16 %v292, %v291
    %v368 = vpack.c.bf16 %v294, %v293
    %v369 = vpack.c.bf16 %v296, %v295
    %v370 = vpack.c.bf16 %v298, %v297
    %v371 = vpack.c.bf16 %v300, %v299
    %v372 = vpack.c.bf16 %v302, %v301
    %v373 = vpack.c.bf16 %v304, %v303
    %v374 = vpack.c.bf16 %v306, %v305
    %v375 = vpack.c.bf16 %v308, %v307
    %v376 = vpack.c.bf16 %v310, %v309
    %v377 = vpack.c.bf16 %v312, %v311
    %v378 = vpack.c.bf16 %v314, %v313
    %v379 = vld [vmem:[%s0] sm:$0xff]
    %v380 = vld [vmem:[%s0 + $0x8] sm:$0xff]
    %v381 = vld [vmem:[%s0 + $0x10] sm:$0xff]
    %v382 = vld [vmem:[%s0 + $0x18] sm:$0xff]
    %v387 = vunpack.c.l.b16 %v379
    %v388 = vunpack.c.h.b16 %v379
    %v389 = vunpack.c.l.b16 %v380
    %v390 = vunpack.c.h.b16 %v380
    %v391 = vunpack.c.l.b16 %v381
    %v392 = vunpack.c.h.b16 %v381
    %v393 = vunpack.c.l.b16 %v382
    %v394 = vunpack.c.h.b16 %v382
    %v395 = vpack.c.b16 %v387, %v387
    %v396 = vpack.c.b16 %v388, %v388
    %v397 = vpack.c.b16 %v389, %v389
    %v398 = vpack.c.b16 %v390, %v390
    %v399 = vpack.c.b16 %v391, %v391
    %v400 = vpack.c.b16 %v392, %v392
    %v401 = vpack.c.b16 %v393, %v393
    %v402 = vpack.c.b16 %v394, %v394
    %411 = vmatpush.bf16.msra.mxu0 %v322
    %412 = vmatpush.bf16.msra.mxu0 %v321
    %413 = vmatpush.bf16.msra.mxu0 %v320
    %414 = vmatpush.bf16.msra.mxu0 %v319
    %415 = vmatpush.bf16.msra.mxu0 %v318
    %416 = vmatpush.bf16.msra.mxu0 %v317
    %417 = vmatpush.bf16.msra.mxu0 %v316
    %418 = vmatpush.bf16.msra.mxu0 %v315
    %419 = vmatmul.bf16.gmra.mxu0 %v395
    %v420 = vpop.f32.mrf.mxu0
    %v421 = vadd.f32 0.0, %v420
    %v422 = vpop.f32.mrf.mxu0
    %423 = vdwg.mxu0
    %424 = vmatpush.bf16.msra.mxu0 %v330
    %425 = vmatpush.bf16.msra.mxu0 %v329
    %426 = vmatpush.bf16.msra.mxu0 %v328
    %427 = vmatpush.bf16.msra.mxu0 %v327
    %428 = vmatpush.bf16.msra.mxu0 %v326
    %429 = vmatpush.bf16.msra.mxu0 %v325
    %430 = vmatpush.bf16.msra.mxu0 %v324
    %431 = vmatpush.bf16.msra.mxu0 %v323
    %432 = vmatmul.bf16.gmra.mxu0 %v396
    %v433 = vpop.f32.mrf.mxu0
    %v434 = vadd.f32 %v421, %v433
    %v435 = vpop.f32.mrf.mxu0
    %436 = vdwg.mxu0
    %437 = vmatpush.bf16.msra.mxu0 %v338
    %438 = vmatpush.bf16.msra.mxu0 %v337
    %439 = vmatpush.bf16.msra.mxu0 %v336
    %440 = vmatpush.bf16.msra.mxu0 %v335
    %441 = vmatpush.bf16.msra.mxu0 %v334
    %442 = vmatpush.bf16.msra.mxu0 %v333
    %443 = vmatpush.bf16.msra.mxu0 %v332
    %444 = vmatpush.bf16.msra.mxu0 %v331
    %445 = vmatmul.bf16.gmra.mxu0 %v397
    %v446 = vpop.f32.mrf.mxu0
    %v447 = vadd.f32 %v434, %v446
    %v448 = vpop.f32.mrf.mxu0
    %449 = vdwg.mxu0
    %450 = vmatpush.bf16.msra.mxu0 %v346
    %451 = vmatpush.bf16.msra.mxu0 %v345
    %452 = vmatpush.bf16.msra.mxu0 %v344
    %453 = vmatpush.bf16.msra.mxu0 %v343
    %454 = vmatpush.bf16.msra.mxu0 %v342
    %455 = vmatpush.bf16.msra.mxu0 %v341
    %456 = vmatpush.bf16.msra.mxu0 %v340
    %457 = vmatpush.bf16.msra.mxu0 %v339
    %458 = vmatmul.bf16.gmra.mxu0 %v398
    %v459 = vpop.f32.mrf.mxu0
    %v460 = vadd.f32 %v447, %v459
    %v461 = vpop.f32.mrf.mxu0
    %462 = vdwg.mxu0
    %463 = vmatpush.bf16.msra.mxu0 %v354
    %464 = vmatpush.bf16.msra.mxu0 %v353
    %465 = vmatpush.bf16.msra.mxu0 %v352
    %466 = vmatpush.bf16.msra.mxu0 %v351
    %467 = vmatpush.bf16.msra.mxu0 %v350
    %468 = vmatpush.bf16.msra.mxu0 %v349
    %469 = vmatpush.bf16.msra.mxu0 %v348
    %470 = vmatpush.bf16.msra.mxu0 %v347
    %471 = vmatmul.bf16.gmra.mxu0 %v399
    %v472 = vpop.f32.mrf.mxu0
    %v473 = vadd.f32 %v460, %v472
    %v474 = vpop.f32.mrf.mxu0
    %475 = vdwg.mxu0
    %476 = vmatpush.bf16.msra.mxu0 %v362
    %477 = vmatpush.bf16.msra.mxu0 %v361
    %478 = vmatpush.bf16.msra.mxu0 %v360
    %479 = vmatpush.bf16.msra.mxu0 %v359
    %480 = vmatpush.bf16.msra.mxu0 %v358
    %481 = vmatpush.bf16.msra.mxu0 %v357
    %482 = vmatpush.bf16.msra.mxu0 %v356
    %483 = vmatpush.bf16.msra.mxu0 %v355
    %484 = vmatmul.bf16.gmra.mxu0 %v400
    %v485 = vpop.f32.mrf.mxu0
    %v486 = vadd.f32 %v473, %v485
    %v487 = vpop.f32.mrf.mxu0
    %488 = vdwg.mxu0
    %489 = vmatpush.bf16.msra.mxu0 %v370
    %490 = vmatpush.bf16.msra.mxu0 %v369
    %491 = vmatpush.bf16.msra.mxu0 %v368
    %492 = vmatpush.bf16.msra.mxu0 %v367
    %493 = vmatpush.bf16.msra.mxu0 %v366
    %494 = vmatpush.bf16.msra.mxu0 %v365
    %495 = vmatpush.bf16.msra.mxu0 %v364
    %496 = vmatpush.bf16.msra.mxu0 %v363
    %497 = vmatmul.bf16.gmra.mxu0 %v401
    %v498 = vpop.f32.mrf.mxu0
    %v499 = vadd.f32 %v486, %v498
    %v500 = vpop.f32.mrf.mxu0
    %501 = vdwg.mxu0
    %502 = vmatpush.bf16.msra.mxu0 %v378
    %503 = vmatpush.bf16.msra.mxu0 %v377
    %504 = vmatpush.bf16.msra.mxu0 %v376
    %505 = vmatpush.bf16.msra.mxu0 %v375
    %506 = vmatpush.bf16.msra.mxu0 %v374
    %507 = vmatpush.bf16.msra.mxu0 %v373
    %508 = vmatpush.bf16.msra.mxu0 %v372
    %509 = vmatpush.bf16.msra.mxu0 %v371
    %510 = vmatmul.bf16.gmra.mxu0 %v402
    %v511 = vpop.f32.mrf.mxu0
    %v512 = vadd.f32 %v499, %v511
    %v513 = vpop.f32.mrf.mxu0
    %514 = vdwg.mxu0
    %v515 = vrot.slane %v512, 4
    %v516 = vadd.f32 %v512, %v515
    %v517 = vrot.slane %v516, 2
    %v518 = vadd.f32 %v516, %v517
    %v519 = vrot.slane %v518, 1
    %v520 = vadd.f32 %v518, %v519
    %521 = vst [vmem:[%s2] sm:$0x1] %v520
    // Predicated region
    $region14: #{_device_forward.2} parent=1 // pred_check
      _
    $region15: #{_device_forward.2} parent=1 // pred_check_branch
      %523 = sbr.rel (0) target = $region17
    $region16: #{_device_forward.2} parent=1 // pred_region
      _
    $region17: #{_device_forward.2} parent=1 // pred_fallthru
      _
    // Predicated region
    $region18: #{_device_forward.2} parent=1 // pred_check
      _
    $region19: #{_device_forward.2} parent=1 // pred_check_branch
      %525 = sbr.rel (0) target = $region21
    $region20: #{_device_forward.2} parent=1 // pred_region
      _
    $region21: #{_device_forward.2} parent=1 // pred_fallthru
      _
    %526 = vsyncpa [#allocation3], 1

</llo_original>
